<compile_context>
chip_gen: v5e
topology: v5e:2x2
jax: 0.10.0
libtpu: 0.0.40
codegen_flags: <defaults>
</compile_context>

<pallas_src>
import jax
import jax.numpy as jnp
from jax.experimental import pallas as pl
from jax.experimental.pallas import tpu as pltpu

_LANE = 128          # pad the output feature dim to a multiple of the lane width
_TILE_B_MAX = 2048   # batch tile cap: ~15 MB double-buffered with f32 x, fits 32 MiB VMEM


def _linear_kernel(x_ref, w_ref, b_ref, o_ref):
    # x_ref: (tile_b, 784) f32,  w_ref: (784, out_pad) bf16 (resident),
    # b_ref: (1, out_pad) f32 (resident),  o_ref: (tile_b, out_pad) f32.
    # In-kernel bf16 cast of x: VPU convert hides under the DMA/MXU, and x is
    # DMA'd from HBM exactly once in f32 (no wrapper-side cast round-trip).
    x_bf = x_ref[...].astype(jnp.bfloat16)
    acc = jnp.dot(x_bf, w_ref[...], preferred_element_type=jnp.float32)
    o_ref[...] = acc + b_ref[...]   # bias added on the f32 accumulator
    # TODO(synk): downstream VAE elementwise work (mu/logvar split, exp,
    # reparam noise) could be fused here to avoid an extra HBM round-trip of
    # the activations, but the reference module stops at the Linear layer.


def prepare_params(w, b, lane=_LANE):
    """One-time parameter prep (NOT on the per-call hot path).

    w: (out_dim, 784) f32, b: (out_dim,) f32
    returns: w_t (784, out_pad) bf16, b_row (1, out_pad) f32
    """
    out_dim, in_dim = w.shape
    out_pad = ((out_dim + lane - 1) // lane) * lane
    w_p = jnp.zeros((out_pad, in_dim), w.dtype).at[:out_dim, :].set(w)
    w_t = jnp.asarray(w_p.T, dtype=jnp.bfloat16)              # (784, out_pad)
    b_row = jnp.zeros((1, out_pad), jnp.float32).at[0, :out_dim].set(b)
    return w_t, b_row


def _pick_tile_b(batch_size):
    # Aim for >= 2 grid steps (both v7x TensorCores engage under "parallel"),
    # sublane-friendly (multiple of 16 >= 8), capped so the double-buffered
    # f32 x tile + f32 out tile fit well inside a 32 MiB VMEM budget.
    half = -(-batch_size // 2)                 # cdiv(B, 2)
    half = ((half + 15) // 16) * 16            # round up to a multiple of 16
    return max(16, min(_TILE_B_MAX, half))


def fc_encoder_mnist_forward(x, w_t, b_row, out_dim):
    """x: (B, C, H, W) with C*H*W == 784; w_t: (784, out_pad) bf16; b_row: (1, out_pad)."""
    batch_size = x.shape[0]
    x_flat = x.reshape(batch_size, -1)                         # (B, 784) f32, no copy/cast
    in_dim = x_flat.shape[1]
    out_pad = w_t.shape[1]

    tile_b = _pick_tile_b(batch_size)
    grid = (pl.cdiv(batch_size, tile_b),)                      # partial tail block is fine

    bytes_accessed = (x_flat.size * 4            # x in, f32
                      + w_t.size * 2             # W resident, bf16
                      + b_row.size * 4           # bias resident, f32
                      + batch_size * out_pad * 4)  # y out, f32

    y = pl.pallas_call(
        _linear_kernel,
        out_shape=jax.ShapeDtypeStruct((batch_size, out_pad), jnp.float32),
        grid_spec=pltpu.PrefetchScalarGridSpec(
            num_scalar_prefetch=0,
            grid=grid,
            in_specs=[
                pl.BlockSpec((tile_b, in_dim), lambda i: (i, 0)),   # x tile (pipelined)
                pl.BlockSpec((in_dim, out_pad), lambda i: (0, 0)),  # W resident
                pl.BlockSpec((1, out_pad), lambda i: (0, 0)),       # b resident
            ],
            out_specs=pl.BlockSpec((tile_b, out_pad), lambda i: (i, 0)),
        ),
        compiler_params=pltpu.CompilerParams(
            dimension_semantics=("parallel",),       # shard batch tiles across TCs
            vmem_limit_bytes=32 * 1024 * 1024,       # safe on v5e/v6e and v7x (64 MiB/TC)
        ),
        cost_estimate=pl.CostEstimate(
            flops=2 * batch_size * in_dim * out_pad,
            transcendentals=0,
            bytes_accessed=bytes_accessed,
        ),
    )(x_flat, w_t, b_row)

    # Slice away the lane padding so the caller sees (B, 2*hidden_dim).
    # NOTE: padded columns (out_dim..out_pad-1) hold bias-only values and are
    # never exposed; partial-tail-block rows are masked on store by Pallas.
    return y[:, :out_dim]


if __name__ == "__main__":
    hidden_dim = 32                  # -> output features = 2 * hidden_dim = 64
    batch = 2

    key = jax.random.PRNGKey(0)
    kx, kw, kb = jax.random.split(key, 3)

    # Deterministic synthetic parameters (shapes from nn.Linear(784, 2*hidden_dim)).
    bound = 1.0 / (784.0 ** 0.5)
    w = jax.random.uniform(kw, (2 * hidden_dim, 784), jnp.float32, -bound, bound)
    b = jax.random.uniform(kb, (2 * hidden_dim,), jnp.float32, -bound, bound)

    # MNIST-like NCHW input: (B, 1, 28, 28) flattens to (B, 784).
    x = jax.random.normal(kx, (batch, 1, 28, 28), jnp.float32)

    # One-time parameter prep (transpose + lane padding + bf16 cast of W).
    w_t, b_row = prepare_params(w, b)

    y = fc_encoder_mnist_forward(x, w_t, b_row, out_dim=2 * hidden_dim)
    y = jax.block_until_ready(y)

    # Reference checks in plain JAX.
    x_flat = x.reshape(batch, -1)
    #  (a) same-precision reference: bf16 operands, f32 accumulation.
    y_ref_bf16 = jnp.dot(x_flat.astype(jnp.bfloat16), w.T.astype(jnp.bfloat16),
                         preferred_element_type=jnp.float32) + b
    #  (b) full f32 reference (loose tolerance absorbs bf16 operand rounding).
    y_ref_f32 = x_flat @ w.T + b

    assert y.shape == (batch, 2 * hidden_dim)
    assert jnp.allclose(y, y_ref_bf16, atol=1e-4, rtol=1e-4)
    assert jnp.allclose(y, y_ref_f32, atol=5e-2, rtol=5e-2)

    print("KERNEL_OK")
</pallas_src>

<mosaic_0001>
module attributes {stable_mosaic.version = 11 : i64} {
  func.func @_linear_kernel(%arg0: i32, %arg1: memref<16x784xf32, #tpu.memory_space<vmem>>, %arg2: memref<784x128xbf16, #tpu.memory_space<vmem>>, %arg3: memref<1x128xf32, #tpu.memory_space<vmem>>, %arg4: memref<16x128xf32, #tpu.memory_space<vmem>>) attributes {dimension_semantics = [#tpu.dimension_semantics<parallel>], iteration_bounds = array<i64: 1>, scalar_prefetch = 0 : i64, scratch_operands = 0 : i64, tpu.core_type = #tpu.core_type<tc>, window_params = [{transform_indices = @transform_0, window_bounds = array<i64: 16, 784>}, {pipeline_mode = #tpu.pipeline_mode<synchronous>, transform_indices = @transform_1, window_bounds = array<i64: 784, 128>}, {pipeline_mode = #tpu.pipeline_mode<synchronous>, transform_indices = @transform_2, window_bounds = array<i64: 1, 128>}, {transform_indices = @transform_3, window_bounds = array<i64: 16, 128>}]} {
    %c0 = arith.constant 0 : index
    %c0_0 = arith.constant 0 : index
    %0 = vector.load %arg1[%c0, %c0_0] : memref<16x784xf32, #tpu.memory_space<vmem>>, vector<16x784xf32>
    %1 = arith.truncf %0 : vector<16x784xf32> to vector<16x784xbf16>
    %c0_1 = arith.constant 0 : index
    %c0_2 = arith.constant 0 : index
    %2 = vector.load %arg2[%c0_1, %c0_2] : memref<784x128xbf16, #tpu.memory_space<vmem>>, vector<784x128xbf16>
    %cst = arith.constant dense<0.000000e+00> : vector<16x128xf32>
    %3 = tpu.matmul %1, %2, %cst {dimension_numbers = #tpu.dot_dimension_numbers<[1], [0], [0], [1], [0, 0, 1, 1], [], []>} : vector<16x784xbf16>, vector<784x128xbf16>, vector<16x128xf32> -> vector<16x128xf32>
    %c0_3 = arith.constant 0 : index
    %c0_4 = arith.constant 0 : index
    %4 = vector.load %arg3[%c0_3, %c0_4] : memref<1x128xf32, #tpu.memory_space<vmem>>, vector<1x128xf32>
    %5 = vector.broadcast %4 : vector<1x128xf32> to vector<16x128xf32>
    %6 = arith.addf %3, %5 : vector<16x128xf32>
    %c0_5 = arith.constant 0 : index
    %c0_6 = arith.constant 0 : index
    %7 = vector.load %arg4[%c0_5, %c0_6] : memref<16x128xf32, #tpu.memory_space<vmem>>, vector<16x128xf32>
    tpu.vector_store %arg4[%c0_5, %c0_6], %6 {strides = array<i32>} : memref<16x128xf32, #tpu.memory_space<vmem>>, vector<16x128xf32>,
    return
  }
  func.func @transform_0(%arg0: i32) -> (i32, i32) {
    %c0_i32 = arith.constant 0 : i32
    %c0_i32_0 = arith.constant 0 : i32
    return %arg0, %c0_i32 : i32, i32
  }
  func.func @transform_1(%arg0: i32) -> (i32, i32) {
    %c0_i32 = arith.constant 0 : i32
    %c0_i32_0 = arith.constant 0 : i32
    %c0_i32_1 = arith.constant 0 : i32
    return %c0_i32, %c0_i32_0 : i32, i32
  }
  func.func @transform_2(%arg0: i32) -> (i32, i32) {
    %c0_i32 = arith.constant 0 : i32
    %c0_i32_0 = arith.constant 0 : i32
    %c0_i32_1 = arith.constant 0 : i32
    return %c0_i32, %c0_i32_0 : i32, i32
  }
  func.func @transform_3(%arg0: i32) -> (i32, i32) {
    %c0_i32 = arith.constant 0 : i32
    %c0_i32_0 = arith.constant 0 : i32
    return %arg0, %c0_i32 : i32, i32
  }
}

</mosaic_0001>

<llo_original>
// kernel: tpu_custom_call.1
$region0: #{tpu_custom_call.1}
  #allocation0 [shape = 'u32[]', space=smem, size = 0x4, offset = 0x4, fixed_abs, tag = 'smem constant byte address 0x4 - core index']
  #allocation1 [shape = 'u32[72,128]{1,0:T(1,128)}', space=vmem, size = 0x9000, scoped, tag = 'internal scratch']
  %s0 = inlined_call_operand.hbm [shape: f32[2,784], index: 0, kind: input, shape index: {}]
  %s1 = inlined_call_operand.hbm [shape: bf16[784,128], index: 1, kind: input, shape index: {}]
  %s2 = inlined_call_operand.vmem [shape: f32[1,128], index: 2, kind: input, shape index: {}]
  %s3 = inlined_call_operand.hbm [shape: f32[2,128], index: 3, kind: output, shape index: {}]
  %s4 = sld [smem:[#allocation0]]
  $region30: #{tpu_custom_call.1} parent=0
    _
  %s6 = ssub.s32 1, %s4
  %s7 = scalar_select 0, %s6, %s4
  $region1: #{tpu_custom_call.1} parent=0
    #allocation2 [shape = 'u8[57344]{0}', space=vmem, size = 0xe000, scoped, tag = 'input window, operand 0, single buffered']
    #allocation3 [shape = 's32[1]{0}', space=sflag, size = 0x4, scoped, tag = 'scoped memory for tpu_custom_call.1']
    #allocation4 [shape = 's32[1]{0}', space=sflag, size = 0x4, scoped, tag = 'scoped memory for tpu_custom_call.1']
    #allocation5 [shape = 'u8[200704]{0}', space=vmem, size = 0x31000, scoped, tag = 'input window, operand 1, single buffered']
    #allocation6 [shape = 's32[1]{0}', space=sflag, size = 0x4, scoped, tag = 'scoped memory for tpu_custom_call.1']
    #allocation7 [shape = 'u8[8192]{0}', space=vmem, size = 0x2000, scoped, tag = 'output window, operand 0, single buffered']
    %8 = vsyncpa [#allocation3], 0
    %9 = vsyncpa [#allocation6], 0
    %10 = vsyncpa [#allocation4], 0
    // Predicated region
    $region2: #{tpu_custom_call.1} parent=1 // pred_check
      _
    $region3: #{tpu_custom_call.1} parent=1 // pred_check_branch
      %12 = sbr.rel (0) target = $region5
    $region4: #{tpu_custom_call.1} parent=1 // pred_region
      %14 = vsyncadd [#allocation3], 1568
      %s15 = sshll.u32 %s0, 4
      %s16 = int_to_ptr.hbm [resolvable:$true] %s15
      %s17 = sshll.u32 [#allocation2], 4
      %s18 = int_to_ptr.vmem [resolvable:$true] %s17
      %23 = dma.hbm_to_vmem [thread:$0]  %s16, 224, %s18, [#allocation3], 224, 224, 14
    $region5: #{tpu_custom_call.1} parent=1 // pred_fallthru
      _
    // Predicated region
    $region6: #{tpu_custom_call.1} parent=1 // pred_check
      _
    $region7: #{tpu_custom_call.1} parent=1 // pred_check_branch
      %25 = sbr.rel (0) target = $region9
    $region8: #{tpu_custom_call.1} parent=1 // pred_region
      %27 = vsyncadd [#allocation6], 0
      %s28 = sshll.u32 %s1, 4
      %s29 = int_to_ptr.hbm [resolvable:$true] %s28
      %s30 = sshll.u32 [#allocation5], 4
      %s31 = int_to_ptr.vmem [resolvable:$true] %s30
      %36 = dma.hbm_to_vmem [thread:$0]  %s29, 6272, %s31, [#allocation6], 64, 64, 4
    $region9: #{tpu_custom_call.1} parent=1 // pred_fallthru
      _
    // Predicated region
    $region10: #{tpu_custom_call.1} parent=1 // pred_check
      _
    $region11: #{tpu_custom_call.1} parent=1 // pred_check_branch
      %38 = sbr.rel (0) target = $region13
    $region12: #{tpu_custom_call.1} parent=1 // pred_region
      _
    $region13: #{tpu_custom_call.1} parent=1 // pred_fallthru
      _
    // Predicated region
    $region14: #{tpu_custom_call.1} parent=1 // pred_check
      _
    $region15: #{tpu_custom_call.1} parent=1 // pred_check_branch
      %40 = sbr.rel (0) target = $region17
    $region16: #{tpu_custom_call.1} parent=1 // pred_region
      %42 = dma.done [#allocation3], 1792
    $region17: #{tpu_custom_call.1} parent=1 // pred_fallthru
      _
    // Predicated region
    $region18: #{tpu_custom_call.1} parent=1 // pred_check
      _
    $region19: #{tpu_custom_call.1} parent=1 // pred_check_branch
      %44 = sbr.rel (0) target = $region21
    $region20: #{tpu_custom_call.1} parent=1 // pred_region
      %46 = dma.done [#allocation6], 6272
    $region21: #{tpu_custom_call.1} parent=1 // pred_fallthru
      _
    %v48 = vld [vmem:[#allocation2] sm:$0xff]
    %v49 = vld [vmem:[#allocation2 + $0x8] sm:$0x3f]
    %v50 = vld [vmem:[#allocation2 + $0xe] sm:$0xff]
    %v51 = vld [vmem:[#allocation2 + $0x16] sm:$0x3f]
    %v52 = vld [vmem:[#allocation2 + $0x1c] sm:$0xff]
    %v53 = vld [vmem:[#allocation2 + $0x24] sm:$0x3f]
    %v54 = vld [vmem:[#allocation2 + $0x2a] sm:$0xff]
    %v55 = vld [vmem:[#allocation2 + $0x32] sm:$0x3f]
    %v56 = vld [vmem:[#allocation2 + $0x38] sm:$0xff]
    %v57 = vld [vmem:[#allocation2 + $0x40] sm:$0x3f]
    %v58 = vld [vmem:[#allocation2 + $0x46] sm:$0xff]
    %v59 = vld [vmem:[#allocation2 + $0x4e] sm:$0x3f]
    %v60 = vld [vmem:[#allocation2 + $0x54] sm:$0xff]
    %v61 = vld [vmem:[#allocation2 + $0x5c] sm:$0x3f]
    %v62 = vld [vmem:[#allocation2 + $0x62] sm:$0xff]
    %v63 = vld [vmem:[#allocation2 + $0x6a] sm:$0x3f]
    %80 = vst [vmem:[#allocation1] ss:$4 sm:$0xff] %v48
    %s81 = scalar_lea.vmem [#allocation1], 1
    %82 = vst [vmem:[%s81] ss:$4 sm:$0xff] %v50
    %s83 = scalar_lea.vmem [#allocation1], 2
    %84 = vst [vmem:[%s83] ss:$4 sm:$0xff] %v52
    %s85 = scalar_lea.vmem [#allocation1], 3
    %86 = vst [vmem:[%s85] ss:$4 sm:$0xff] %v54
    %s87 = scalar_lea.vmem [#allocation1], 32
    %88 = vst [vmem:[%s87] ss:$4 sm:$0xff] %v49
    %s89 = scalar_lea.vmem [#allocation1], 33
    %90 = vst [vmem:[%s89] ss:$4 sm:$0xff] %v51
    %s91 = scalar_lea.vmem [#allocation1], 34
    %92 = vst [vmem:[%s91] ss:$4 sm:$0xff] %v53
    %s93 = scalar_lea.vmem [#allocation1], 35
    %94 = vst [vmem:[%s93] ss:$4 sm:$0xff] %v55
    %v95 = vld.sshfl [vmem:[#allocation1] sm:$0xff pattern:$0x73625140]
    %v96 = vld.sshfl [vmem:[#allocation1 + $0x8] sm:$0xff pattern:$0x73625140]
    %v97 = vld.sshfl [vmem:[#allocation1 + $0x10] sm:$0xff pattern:$0x73625140]
    %v98 = vld.sshfl [vmem:[#allocation1 + $0x18] sm:$0xff pattern:$0x73625140]
    %v99 = vld.sshfl [vmem:[#allocation1 + $0x20] sm:$0xff pattern:$0x73625140]
    %v100 = vld.sshfl [vmem:[#allocation1 + $0x28] sm:$0xff pattern:$0x73625140]
    %v101 = vld.sshfl [vmem:[#allocation1 + $0x30] sm:$0xff pattern:$0x73625140]
    %102 = vst [vmem:[#allocation1] ss:$4 sm:$0xff] %v56
    %103 = vst [vmem:[%s81] ss:$4 sm:$0xff] %v58
    %104 = vst [vmem:[%s83] ss:$4 sm:$0xff] %v60
    %105 = vst [vmem:[%s85] ss:$4 sm:$0xff] %v62
    %106 = vst [vmem:[%s87] ss:$4 sm:$0xff] %v57
    %107 = vst [vmem:[%s89] ss:$4 sm:$0xff] %v59
    %108 = vst [vmem:[%s91] ss:$4 sm:$0xff] %v61
    %109 = vst [vmem:[%s93] ss:$4 sm:$0xff] %v63
    %v110 = vld.sshfl [vmem:[#allocation1] sm:$0xff pattern:$0x73625140]
    %v111 = vld.sshfl [vmem:[#allocation1 + $0x8] sm:$0xff pattern:$0x73625140]
    %v112 = vld.sshfl [vmem:[#allocation1 + $0x10] sm:$0xff pattern:$0x73625140]
    %v113 = vld.sshfl [vmem:[#allocation1 + $0x18] sm:$0xff pattern:$0x73625140]
    %v114 = vld.sshfl [vmem:[#allocation1 + $0x20] sm:$0xff pattern:$0x73625140]
    %v115 = vld.sshfl [vmem:[#allocation1 + $0x28] sm:$0xff pattern:$0x73625140]
    %v116 = vld.sshfl [vmem:[#allocation1 + $0x30] sm:$0xff pattern:$0x73625140]
    %v131 = vpack.c.bf16 %v110, %v95
    %v132 = vpack.c.bf16 %v111, %v96
    %v133 = vpack.c.bf16 %v112, %v97
    %v134 = vpack.c.bf16 %v113, %v98
    %v135 = vpack.c.bf16 %v114, %v99
    %v136 = vpack.c.bf16 %v115, %v100
    %v137 = vpack.c.bf16 %v116, %v101
    %v138 = vld [vmem:[#allocation5] sm:$0xf]
    %v139 = vld [vmem:[#allocation5 + $0x4] sm:$0xf]
    %v140 = vld [vmem:[#allocation5 + $0x8] sm:$0xf]
    %v141 = vld [vmem:[#allocation5 + $0xc] sm:$0xf]
    %v142 = vld [vmem:[#allocation5 + $0x10] sm:$0xf]
    %v143 = vld [vmem:[#allocation5 + $0x14] sm:$0xf]
    %v144 = vld [vmem:[#allocation5 + $0x18] sm:$0xf]
    %v145 = vld [vmem:[#allocation5 + $0x1c] sm:$0xf]
    %v146 = vld [vmem:[#allocation5 + $0x20] sm:$0xf]
    %v147 = vld [vmem:[#allocation5 + $0x24] sm:$0xf]
    %v148 = vld [vmem:[#allocation5 + $0x28] sm:$0xf]
    %v149 = vld [vmem:[#allocation5 + $0x2c] sm:$0xf]
    %v150 = vld [vmem:[#allocation5 + $0x30] sm:$0xf]
    %v151 = vld [vmem:[#allocation5 + $0x34] sm:$0xf]
    %v152 = vld [vmem:[#allocation5 + $0x38] sm:$0xf]
    %v153 = vld [vmem:[#allocation5 + $0x3c] sm:$0xf]
    %v154 = vld [vmem:[#allocation5 + $0x40] sm:$0xf]
    %v155 = vld [vmem:[#allocation5 + $0x44] sm:$0xf]
    %v156 = vld [vmem:[#allocation5 + $0x48] sm:$0xf]
    %v157 = vld [vmem:[#allocation5 + $0x4c] sm:$0xf]
    %v158 = vld [vmem:[#allocation5 + $0x50] sm:$0xf]
    %v159 = vld [vmem:[#allocation5 + $0x54] sm:$0xf]
    %v160 = vld [vmem:[#allocation5 + $0x58] sm:$0xf]
    %v161 = vld [vmem:[#allocation5 + $0x5c] sm:$0xf]
    %v162 = vld [vmem:[#allocation5 + $0x60] sm:$0xf]
    %v163 = vld [vmem:[#allocation5 + $0x64] sm:$0xf]
    %v164 = vld [vmem:[#allocation5 + $0x68] sm:$0xf]
    %v165 = vld [vmem:[#allocation5 + $0x6c] sm:$0xf]
    %v166 = vld [vmem:[#allocation5 + $0x70] sm:$0xf]
    %v167 = vld [vmem:[#allocation5 + $0x74] sm:$0xf]
    %v168 = vld [vmem:[#allocation5 + $0x78] sm:$0xf]
    %v169 = vld [vmem:[#allocation5 + $0x7c] sm:$0xf]
    %v170 = vld [vmem:[#allocation5 + $0x80] sm:$0xf]
    %v171 = vld [vmem:[#allocation5 + $0x84] sm:$0xf]
    %v172 = vld [vmem:[#allocation5 + $0x88] sm:$0xf]
    %v173 = vld [vmem:[#allocation5 + $0x8c] sm:$0xf]
    %v174 = vld [vmem:[#allocation5 + $0x90] sm:$0xf]
    %v175 = vld [vmem:[#allocation5 + $0x94] sm:$0xf]
    %v176 = vld [vmem:[#allocation5 + $0x98] sm:$0xf]
    %v177 = vld [vmem:[#allocation5 + $0x9c] sm:$0xf]
    %v178 = vld [vmem:[#allocation5 + $0xa0] sm:$0xf]
    %v179 = vld [vmem:[#allocation5 + $0xa4] sm:$0xf]
    %v180 = vld [vmem:[#allocation5 + $0xa8] sm:$0xf]
    %v181 = vld [vmem:[#allocation5 + $0xac] sm:$0xf]
    %v182 = vld [vmem:[#allocation5 + $0xb0] sm:$0xf]
    %v183 = vld [vmem:[#allocation5 + $0xb4] sm:$0xf]
    %v184 = vld [vmem:[#allocation5 + $0xb8] sm:$0xf]
    %v185 = vld [vmem:[#allocation5 + $0xbc] sm:$0xf]
    %v186 = vld [vmem:[#allocation5 + $0xc0] sm:$0xf]
    %v187 = vld [vmem:[#allocation5 + $0xc4] sm:$0xf]
    %v188 = vld [vmem:[#allocation5 + $0xc8] sm:$0xf]
    %v189 = vld [vmem:[#allocation5 + $0xcc] sm:$0xf]
    %v190 = vld [vmem:[#allocation5 + $0xd0] sm:$0xf]
    %v191 = vld [vmem:[#allocation5 + $0xd4] sm:$0xf]
    %v192 = vld [vmem:[#allocation5 + $0xd8] sm:$0xf]
    %v193 = vld [vmem:[#allocation5 + $0xdc] sm:$0xf]
    %v194 = vld [vmem:[#allocation5 + $0xe0] sm:$0xf]
    %v195 = vld [vmem:[#allocation5 + $0xe4] sm:$0xf]
    %v196 = vld [vmem:[#allocation5 + $0xe8] sm:$0xf]
    %v197 = vld [vmem:[#allocation5 + $0xec] sm:$0xf]
    %v198 = vld [vmem:[#allocation5 + $0xf0] sm:$0xf]
    %v199 = vld [vmem:[#allocation5 + $0xf4] sm:$0xf]
    %v200 = vld [vmem:[#allocation5 + $0xf8] sm:$0xf]
    %v201 = vld [vmem:[#allocation5 + $0xfc] sm:$0xf]
    %v202 = vld [vmem:[#allocation5 + $0x100] sm:$0xf]
    %v203 = vld [vmem:[#allocation5 + $0x104] sm:$0xf]
    %v204 = vld [vmem:[#allocation5 + $0x108] sm:$0xf]
    %v205 = vld [vmem:[#allocation5 + $0x10c] sm:$0xf]
    %v206 = vld [vmem:[#allocation5 + $0x110] sm:$0xf]
    %v207 = vld [vmem:[#allocation5 + $0x114] sm:$0xf]
    %v208 = vld [vmem:[#allocation5 + $0x118] sm:$0xf]
    %v209 = vld [vmem:[#allocation5 + $0x11c] sm:$0xf]
    %v210 = vld [vmem:[#allocation5 + $0x120] sm:$0xf]
    %v211 = vld [vmem:[#allocation5 + $0x124] sm:$0xf]
    %v212 = vld [vmem:[#allocation5 + $0x128] sm:$0xf]
    %v213 = vld [vmem:[#allocation5 + $0x12c] sm:$0xf]
    %v214 = vld [vmem:[#allocation5 + $0x130] sm:$0xf]
    %v215 = vld [vmem:[#allocation5 + $0x134] sm:$0xf]
    %v216 = vld [vmem:[#allocation5 + $0x138] sm:$0xf]
    %v217 = vld [vmem:[#allocation5 + $0x13c] sm:$0xf]
    %v218 = vld [vmem:[#allocation5 + $0x140] sm:$0xf]
    %v219 = vld [vmem:[#allocation5 + $0x144] sm:$0xf]
    %v220 = vld [vmem:[#allocation5 + $0x148] sm:$0xf]
    %v221 = vld [vmem:[#allocation5 + $0x14c] sm:$0xf]
    %v222 = vld [vmem:[#allocation5 + $0x150] sm:$0xf]
    %v223 = vld [vmem:[#allocation5 + $0x154] sm:$0xf]
    %v224 = vld [vmem:[#allocation5 + $0x158] sm:$0xf]
    %v225 = vld [vmem:[#allocation5 + $0x15c] sm:$0xf]
    %v226 = vld [vmem:[#allocation5 + $0x160] sm:$0xf]
    %v227 = vld [vmem:[#allocation5 + $0x164] sm:$0xf]
    %v228 = vld [vmem:[#allocation5 + $0x168] sm:$0xf]
    %v229 = vld [vmem:[#allocation5 + $0x16c] sm:$0xf]
    %v230 = vld [vmem:[#allocation5 + $0x170] sm:$0xf]
    %v231 = vld [vmem:[#allocation5 + $0x174] sm:$0xf]
    %v232 = vld [vmem:[#allocation5 + $0x178] sm:$0xf]
    %v233 = vld [vmem:[#allocation5 + $0x17c] sm:$0xf]
    %v234 = vld [vmem:[#allocation5 + $0x180] sm:$0xf]
    %v235 = vld [vmem:[#allocation5 + $0x184] sm:$0xf]
    %v236 = vld [vmem:[%s2] sm:$0x1]
    %v238 = vperm.slane %v236, 0
    %v338 = vunpack.c.l.b16 %v138
    %v339 = vunpack.c.l.b16 %v139
    %v340 = vunpack.c.l.b16 %v140
    %v341 = vunpack.c.l.b16 %v141
    %v342 = vunpack.c.l.b16 %v142
    %v343 = vunpack.c.l.b16 %v143
    %v344 = vunpack.c.l.b16 %v144
    %v345 = vunpack.c.l.b16 %v145
    %v346 = vunpack.c.l.b16 %v146
    %v347 = vunpack.c.l.b16 %v147
    %v348 = vunpack.c.l.b16 %v148
    %v349 = vunpack.c.l.b16 %v149
    %v350 = vunpack.c.l.b16 %v150
    %v351 = vunpack.c.l.b16 %v151
    %v352 = vunpack.c.l.b16 %v152
    %v353 = vunpack.c.l.b16 %v153
    %v354 = vunpack.c.l.b16 %v154
    %v355 = vunpack.c.l.b16 %v155
    %v356 = vunpack.c.l.b16 %v156
    %v357 = vunpack.c.l.b16 %v157
    %v358 = vunpack.c.l.b16 %v158
    %v359 = vunpack.c.l.b16 %v159
    %v360 = vunpack.c.l.b16 %v160
    %v361 = vunpack.c.l.b16 %v161
    %v362 = vunpack.c.l.b16 %v162
    %v363 = vunpack.c.l.b16 %v163
    %v364 = vunpack.c.l.b16 %v164
    %v365 = vunpack.c.l.b16 %v165
    %v366 = vunpack.c.l.b16 %v166
    %v367 = vunpack.c.l.b16 %v167
    %v368 = vunpack.c.l.b16 %v168
    %v369 = vunpack.c.l.b16 %v169
    %v370 = vunpack.c.l.b16 %v170
    %v371 = vunpack.c.l.b16 %v171
    %v372 = vunpack.c.l.b16 %v172
    %v373 = vunpack.c.l.b16 %v173
    %v374 = vunpack.c.l.b16 %v174
    %v375 = vunpack.c.l.b16 %v175
    %v376 = vunpack.c.l.b16 %v176
    %v377 = vunpack.c.l.b16 %v177
    %v378 = vunpack.c.l.b16 %v178
    %v379 = vunpack.c.l.b16 %v179
    %v380 = vunpack.c.l.b16 %v180
    %v381 = vunpack.c.l.b16 %v181
    %v382 = vunpack.c.l.b16 %v182
    %v383 = vunpack.c.l.b16 %v183
    %v384 = vunpack.c.l.b16 %v184
    %v385 = vunpack.c.l.b16 %v185
    %v386 = vunpack.c.l.b16 %v186
    %v387 = vunpack.c.l.b16 %v187
    %v388 = vunpack.c.l.b16 %v188
    %v389 = vunpack.c.l.b16 %v189
    %v390 = vunpack.c.l.b16 %v190
    %v391 = vunpack.c.l.b16 %v191
    %v392 = vunpack.c.l.b16 %v192
    %v393 = vunpack.c.l.b16 %v193
    %v394 = vunpack.c.l.b16 %v194
    %v395 = vunpack.c.l.b16 %v195
    %v396 = vunpack.c.l.b16 %v196
    %v397 = vunpack.c.l.b16 %v197
    %v398 = vunpack.c.l.b16 %v198
    %v399 = vunpack.c.l.b16 %v199
    %v400 = vunpack.c.l.b16 %v200
    %v401 = vunpack.c.l.b16 %v201
    %v402 = vunpack.c.l.b16 %v202
    %v403 = vunpack.c.l.b16 %v203
    %v404 = vunpack.c.l.b16 %v204
    %v405 = vunpack.c.l.b16 %v205
    %v406 = vunpack.c.l.b16 %v206
    %v407 = vunpack.c.l.b16 %v207
    %v408 = vunpack.c.l.b16 %v208
    %v409 = vunpack.c.l.b16 %v209
    %v410 = vunpack.c.l.b16 %v210
    %v411 = vunpack.c.l.b16 %v211
    %v412 = vunpack.c.l.b16 %v212
    %v413 = vunpack.c.l.b16 %v213
    %v414 = vunpack.c.l.b16 %v214
    %v415 = vunpack.c.l.b16 %v215
    %v416 = vunpack.c.l.b16 %v216
    %v417 = vunpack.c.l.b16 %v217
    %v418 = vunpack.c.l.b16 %v218
    %v419 = vunpack.c.l.b16 %v219
    %v420 = vunpack.c.l.b16 %v220
    %v421 = vunpack.c.l.b16 %v221
    %v422 = vunpack.c.l.b16 %v222
    %v423 = vunpack.c.l.b16 %v223
    %v424 = vunpack.c.l.b16 %v224
    %v425 = vunpack.c.l.b16 %v225
    %v426 = vunpack.c.l.b16 %v226
    %v427 = vunpack.c.l.b16 %v227
    %v428 = vunpack.c.l.b16 %v228
    %v429 = vunpack.c.l.b16 %v229
    %v430 = vunpack.c.l.b16 %v230
    %v431 = vunpack.c.l.b16 %v231
    %v432 = vunpack.c.l.b16 %v232
    %v433 = vunpack.c.l.b16 %v233
    %v434 = vunpack.c.l.b16 %v234
    %v435 = vunpack.c.l.b16 %v235
    %v436 = vpack.c.b16 %v339, %v338
    %v437 = vpack.c.b16 %v341, %v340
    %v438 = vpack.c.b16 %v343, %v342
    %v439 = vpack.c.b16 %v345, %v344
    %v440 = vpack.c.b16 %v347, %v346
    %v441 = vpack.c.b16 %v349, %v348
    %v442 = vpack.c.b16 %v351, %v350
    %v443 = vpack.c.b16 %v353, %v352
    %v444 = vpack.c.b16 %v355, %v354
    %v445 = vpack.c.b16 %v357, %v356
    %v446 = vpack.c.b16 %v359, %v358
    %v447 = vpack.c.b16 %v361, %v360
    %v448 = vpack.c.b16 %v363, %v362
    %v449 = vpack.c.b16 %v365, %v364
    %v450 = vpack.c.b16 %v367, %v366
    %v451 = vpack.c.b16 %v369, %v368
    %v452 = vpack.c.b16 %v371, %v370
    %v453 = vpack.c.b16 %v373, %v372
    %v454 = vpack.c.b16 %v375, %v374
    %v455 = vpack.c.b16 %v377, %v376
    %v456 = vpack.c.b16 %v379, %v378
    %v457 = vpack.c.b16 %v381, %v380
    %v458 = vpack.c.b16 %v383, %v382
    %v459 = vpack.c.b16 %v385, %v384
    %v460 = vpack.c.b16 %v387, %v386
    %v461 = vpack.c.b16 %v389, %v388
    %v462 = vpack.c.b16 %v391, %v390
    %v463 = vpack.c.b16 %v393, %v392
    %v464 = vpack.c.b16 %v395, %v394
    %v465 = vpack.c.b16 %v397, %v396
    %v466 = vpack.c.b16 %v399, %v398
    %v467 = vpack.c.b16 %v401, %v400
    %v468 = vpack.c.b16 %v403, %v402
    %v469 = vpack.c.b16 %v405, %v404
    %v470 = vpack.c.b16 %v407, %v406
    %v471 = vpack.c.b16 %v409, %v408
    %v472 = vpack.c.b16 %v411, %v410
    %v473 = vpack.c.b16 %v413, %v412
    %v474 = vpack.c.b16 %v415, %v414
    %v475 = vpack.c.b16 %v417, %v416
    %v476 = vpack.c.b16 %v419, %v418
    %v477 = vpack.c.b16 %v421, %v420
    %v478 = vpack.c.b16 %v423, %v422
    %v479 = vpack.c.b16 %v425, %v424
    %v480 = vpack.c.b16 %v427, %v426
    %v481 = vpack.c.b16 %v429, %v428
    %v482 = vpack.c.b16 %v431, %v430
    %v483 = vpack.c.b16 %v433, %v432
    %v484 = vpack.c.b16 %v435, %v434
    %vm534 = vcmask 130048
    %v536 = vsel %vm534, %v137, 0
    %538 = vmatpush.bf16.msra.mxu0 %v443
    %539 = vmatpush.bf16.msra.mxu0 %v442
    %540 = vmatpush.bf16.msra.mxu0 %v441
    %541 = vmatpush.bf16.msra.mxu0 %v440
    %542 = vmatpush.bf16.msra.mxu0 %v439
    %543 = vmatpush.bf16.msra.mxu0 %v438
    %544 = vmatpush.bf16.msra.mxu0 %v437
    %545 = vmatpush.bf16.msra.mxu0 %v436
    %546 = vmatmul.bf16.gmra.mxu0 %v131
    %v547 = vpop.f32.mrf.mxu0
    %v548 = vadd.f32 %v238, %v547
    %v549 = vpop.f32.mrf.mxu0
    %v550 = vadd.f32 %v238, %v549
    %551 = vdwg.mxu0
    %552 = vmatpush.bf16.msra.mxu0 %v451
    %553 = vmatpush.bf16.msra.mxu0 %v450
    %554 = vmatpush.bf16.msra.mxu0 %v449
    %555 = vmatpush.bf16.msra.mxu0 %v448
    %556 = vmatpush.bf16.msra.mxu0 %v447
    %557 = vmatpush.bf16.msra.mxu0 %v446
    %558 = vmatpush.bf16.msra.mxu0 %v445
    %559 = vmatpush.bf16.msra.mxu0 %v444
    %560 = vmatmul.bf16.gmra.mxu0 %v132
    %v561 = vpop.f32.mrf.mxu0
    %v562 = vadd.f32 %v548, %v561
    %v563 = vpop.f32.mrf.mxu0
    %v564 = vadd.f32 %v550, %v563
    %565 = vdwg.mxu0
    %566 = vmatpush.bf16.msra.mxu0 %v459
    %567 = vmatpush.bf16.msra.mxu0 %v458
    %568 = vmatpush.bf16.msra.mxu0 %v457
    %569 = vmatpush.bf16.msra.mxu0 %v456
    %570 = vmatpush.bf16.msra.mxu0 %v455
    %571 = vmatpush.bf16.msra.mxu0 %v454
    %572 = vmatpush.bf16.msra.mxu0 %v453
    %573 = vmatpush.bf16.msra.mxu0 %v452
    %574 = vmatmul.bf16.gmra.mxu0 %v133
    %v575 = vpop.f32.mrf.mxu0
    %v576 = vadd.f32 %v562, %v575
    %v577 = vpop.f32.mrf.mxu0
    %v578 = vadd.f32 %v564, %v577
    %579 = vdwg.mxu0
    %580 = vmatpush.bf16.msra.mxu0 %v467
    %581 = vmatpush.bf16.msra.mxu0 %v466
    %582 = vmatpush.bf16.msra.mxu0 %v465
    %583 = vmatpush.bf16.msra.mxu0 %v464
    %584 = vmatpush.bf16.msra.mxu0 %v463
    %585 = vmatpush.bf16.msra.mxu0 %v462
    %586 = vmatpush.bf16.msra.mxu0 %v461
    %587 = vmatpush.bf16.msra.mxu0 %v460
    %588 = vmatmul.bf16.gmra.mxu0 %v134
    %v589 = vpop.f32.mrf.mxu0
    %v590 = vadd.f32 %v576, %v589
    %v591 = vpop.f32.mrf.mxu0
    %v592 = vadd.f32 %v578, %v591
    %593 = vdwg.mxu0
    %594 = vmatpush.bf16.msra.mxu0 %v475
    %595 = vmatpush.bf16.msra.mxu0 %v474
    %596 = vmatpush.bf16.msra.mxu0 %v473
    %597 = vmatpush.bf16.msra.mxu0 %v472
    %598 = vmatpush.bf16.msra.mxu0 %v471
    %599 = vmatpush.bf16.msra.mxu0 %v470
    %600 = vmatpush.bf16.msra.mxu0 %v469
    %601 = vmatpush.bf16.msra.mxu0 %v468
    %602 = vmatmul.bf16.gmra.mxu0 %v135
    %v603 = vpop.f32.mrf.mxu0
    %v604 = vadd.f32 %v590, %v603
    %v605 = vpop.f32.mrf.mxu0
    %v606 = vadd.f32 %v592, %v605
    %607 = vdwg.mxu0
    %608 = vmatpush.bf16.msra.mxu0 %v483
    %609 = vmatpush.bf16.msra.mxu0 %v482
    %610 = vmatpush.bf16.msra.mxu0 %v481
    %611 = vmatpush.bf16.msra.mxu0 %v480
    %612 = vmatpush.bf16.msra.mxu0 %v479
    %613 = vmatpush.bf16.msra.mxu0 %v478
    %614 = vmatpush.bf16.msra.mxu0 %v477
    %615 = vmatpush.bf16.msra.mxu0 %v476
    %616 = vmatmul.bf16.gmra.mxu0 %v136
    %v617 = vpop.f32.mrf.mxu0
    %v618 = vadd.f32 %v604, %v617
    %v619 = vpop.f32.mrf.mxu0
    %v620 = vadd.f32 %v606, %v619
    %621 = vdwg.mxu0
    %622 = vmatpush.bf16.msra.mxu0 0
    %623 = vmatpush.bf16.msra.mxu0 0
    %624 = vmatpush.bf16.msra.mxu0 0
    %625 = vmatpush.bf16.msra.mxu0 0
    %626 = vmatpush.bf16.msra.mxu0 0
    %627 = vmatpush.bf16.msra.mxu0 0
    %628 = vmatpush.bf16.msra.mxu0 0
    %629 = vmatpush.bf16.msra.mxu0 %v484
    %630 = vmatmul.bf16.gmra.mxu0 %v536
    %v631 = vpop.f32.mrf.mxu0
    %v632 = vadd.f32 %v618, %v631
    %v633 = vpop.f32.mrf.mxu0
    %v634 = vadd.f32 %v620, %v633
    %635 = vdwg.mxu0
    %636 = vst [vmem:[#allocation7] sm:$0xff] %v632
    %637 = vst [vmem:[#allocation7 + $0x8] sm:$0xff] %v634
    // Predicated region
    $region22: #{tpu_custom_call.1} parent=1 // pred_check
      _
    $region23: #{tpu_custom_call.1} parent=1 // pred_check_branch
      %639 = sbr.rel (0) target = $region25
    $region24: #{tpu_custom_call.1} parent=1 // pred_region
      %641 = vsyncadd [#allocation4], 224
      %s642 = sshll.u32 [#allocation7], 4
      %s643 = int_to_ptr.vmem [resolvable:$true] %s642
      %s644 = sshll.u32 %s3, 4
      %s645 = int_to_ptr.hbm [resolvable:$true] %s644
      %650 = dma.vmem_to_hbm [thread:$0]  %s643, 32, %s645, [#allocation4], 32, 32, 2
    $region25: #{tpu_custom_call.1} parent=1 // pred_fallthru
      _
    // Predicated region
    $region26: #{tpu_custom_call.1} parent=1 // pred_check
      _
    $region27: #{tpu_custom_call.1} parent=1 // pred_check_branch
      %652 = sbr.rel (0) target = $region29
    $region28: #{tpu_custom_call.1} parent=1 // pred_region
      %654 = dma.done [#allocation4], 256
    $region29: #{tpu_custom_call.1} parent=1 // pred_fallthru
      _
    %655 = vsyncpa [#allocation3], 1
    %656 = vsyncpa [#allocation6], 1
    %657 = vsyncpa [#allocation4], 1

</llo_original>
